<compile_context>
chip_gen: v7x
topology: tpu7x:2x2x1
jax: 0.10.0
libtpu: 0.0.40
codegen_flags: <defaults>
</compile_context>

<pallas_src>
import functools

import jax
import jax.numpy as jnp
from jax.experimental import pallas as pl
from jax.experimental.pallas import tpu as pltpu


def _round_up(x, m):
    return (x + m - 1) // m * m


# ---------------------------------------------------------------------------
# Generation-aware tiling defaults.
# ---------------------------------------------------------------------------
def tpu_tiling_defaults():
    """(tm, th, vmem_limit_bytes, n_cores) per TPU generation."""
    kind = ""
    try:
        kind = jax.devices()[0].device_kind.lower()
    except Exception:
        pass
    if "7x" in kind or "v7" in kind:
        # 64 MiB VMEM / TC, 2 TCs, 3.2 TB/s HBM: smaller hidden tile, >=2 token tiles.
        return dict(tm=256, th=256, vmem_limit_bytes=52 * 1024 * 1024, n_cores=2)
    if "v6" in kind:
        # 918 TF/s MXU vs ~1.4 TB/s HBM: weight-DMA bound at tm=256 -> use tm=512.
        return dict(tm=512, th=512, vmem_limit_bytes=96 * 1024 * 1024, n_cores=1)
    if "v5" in kind:
        # 197 TF/s MXU, 128 MiB VMEM: tm=256 balances the DMA-bound roofline.
        return dict(tm=256, th=512, vmem_limit_bytes=64 * 1024 * 1024, n_cores=1)
    return dict(tm=256, th=512, vmem_limit_bytes=64 * 1024 * 1024, n_cores=1)


# ---------------------------------------------------------------------------
# Kernel: one GLU FFN layer, grid = (token tiles, hidden tiles).
#   out = (silu(x@W1+b1) * (x@W3+b3)) @ W2 + b2
# W1/W3 are packed block-interleaved along hidden tiles into w13 so a single
# MXU dot with N = 2*th produces both h1 and h3 for the current hidden tile.
# ---------------------------------------------------------------------------
def glu_ffn_kernel(x_ref, w13_ref, b13_ref, w2_ref, b2_ref, o_ref, acc_ref):
    h = pl.program_id(1)

    @pl.when(h == 0)
    def _():
        acc_ref[...] = jnp.zeros_like(acc_ref)

    x = x_ref[...]                                   # (tm, Dp) bf16
    # Fused first matmul: one MXU push with N = 2*th, f32 accumulation.
    h13 = jnp.dot(x, w13_ref[...], preferred_element_type=jnp.float32)
    h13 = h13 + b13_ref[...]                         # bias in f32
    th = h13.shape[-1] // 2                          # static
    h1 = h13[:, :th]
    h3 = h13[:, th:]
    # silu in f32 (no bf16 EUP on v5e).
    g = (h1 * jax.nn.sigmoid(h1)) * h3
    # Second matmul: accumulate over hidden tiles into the f32 VMEM scratch.
    acc_ref[...] += jnp.dot(g.astype(w2_ref.dtype), w2_ref[...],
                            preferred_element_type=jnp.float32)

    @pl.when(h == pl.num_programs(1) - 1)
    def _():
        o_ref[...] = (acc_ref[...] + b2_ref[...]).astype(o_ref.dtype)


def glu_ffn_layer(x, w13, b13, w2, b2, *, tm, th, out_dtype=jnp.bfloat16,
                  vmem_limit_bytes=64 * 1024 * 1024):
    """One GLU FFN layer.

    x:   (Mp, Dp)           bf16, Mp % tm == 0, Dp % 128 == 0
    w13: (Dp, n_h*2*th)     bf16, block-interleaved [W1 tile | W3 tile] per hidden tile
    b13: (1,  n_h*2*th)     f32
    w2:  (Hp, Op)           bf16, Hp = n_h*th, Op % 128 == 0
    b2:  (1,  Op)           f32
    """
    Mp, Dp = x.shape
    Hp, Op = w2.shape
    two_th = 2 * th
    n_h = Hp // th
    assert Mp % tm == 0 and Hp % th == 0 and w13.shape[1] == n_h * two_th
    assert th % 128 == 0 and Dp % 128 == 0 and Op % 128 == 0

    grid = (Mp // tm, n_h)

    return pl.pallas_call(
        glu_ffn_kernel,
        out_shape=jax.ShapeDtypeStruct((Mp, Op), out_dtype),
        grid_spec=pltpu.PrefetchScalarGridSpec(
            num_scalar_prefetch=0,
            grid=grid,
            in_specs=[
                pl.BlockSpec((tm, Dp), lambda i, h: (i, 0)),        # x tile (resident over h)
                pl.BlockSpec((Dp, two_th), lambda i, h: (0, h)),    # fused W1|W3 hidden tile
                pl.BlockSpec((1, two_th), lambda i, h: (0, h)),     # fused b1|b3 hidden tile
                pl.BlockSpec((th, Op), lambda i, h: (h, 0)),        # W2 hidden-row tile
                pl.BlockSpec((1, Op), lambda i, h: (0, 0)),         # b2 (invariant)
            ],
            out_specs=pl.BlockSpec((tm, Op), lambda i, h: (i, 0)),
            scratch_shapes=[pltpu.VMEM((tm, Op), jnp.float32)],     # f32 accumulator
        ),
        compiler_params=pltpu.CompilerParams(
            dimension_semantics=("parallel", "arbitrary"),
            vmem_limit_bytes=vmem_limit_bytes,
        ),
    )(x, w13, b13, w2, b2)


# ---------------------------------------------------------------------------
# Parameter init (mimics torch.nn.Linear) and packing into kernel layout.
# ---------------------------------------------------------------------------
def init_linear_params(key, in_dim, out_dim, bias, dtype=jnp.float32):
    """Uniform(-1/sqrt(in_dim), +1/sqrt(in_dim)); weight returned as (in, out)."""
    kw, kb = jax.random.split(key)
    bound = 1.0 / jnp.sqrt(jnp.array(in_dim, dtype=jnp.float32))
    w = jax.random.uniform(kw, (in_dim, out_dim), dtype=dtype,
                           minval=-bound, maxval=bound)
    if bias:
        b = jax.random.uniform(kb, (1, out_dim), dtype=dtype,
                               minval=-bound, maxval=bound)
    else:
        b = jnp.zeros((1, out_dim), dtype=dtype)
    return w, b


def init_model_params(key, dim, hidden_dim, out_dim, n_layers, bias,
                      dtype=jnp.float32):
    params = []
    for li in range(n_layers):
        layer_out = dim if li < n_layers - 1 else out_dim
        key, k1, k2, k3 = jax.random.split(key, 4)
        w1t, b1 = init_linear_params(k1, dim, hidden_dim, bias, dtype)
        w2t, b2 = init_linear_params(k2, hidden_dim, layer_out, bias, dtype)
        w3t, b3 = init_linear_params(k3, dim, hidden_dim, bias, dtype)
        params.append((w1t, b1, w3t, b3, w2t, b2))
    return params


def _pad2(a, rows, cols):
    # Zero-padding is load-bearing: padded hidden columns contribute
    # silu(0)*0 = 0 to the second matmul, padded rows/cols of W2/b2 stay zero.
    return jnp.pad(a, ((0, rows - a.shape[0]), (0, cols - a.shape[1])))


def pack_layer_params(w1t, b1, w3t, b3, w2t, b2, *, th,
                      compute_dtype=jnp.bfloat16):
    """Pad to lane-dense (multiple-of-128) shapes, fuse W1/W3 block-interleaved."""
    dim, hidden = w1t.shape
    out_dim = w2t.shape[1]
    Dp = _round_up(dim, 128)
    Op = _round_up(out_dim, 128)
    Hp = _round_up(hidden, 128)

    # Hidden tile must be a lane-dense multiple of 128 that divides Hp.
    th_eff = min(_round_up(th, 128), Hp)
    assert th_eff % 128 == 0
    Hp = _round_up(Hp, th_eff)
    assert Hp % th_eff == 0
    n_h = Hp // th_eff

    w1p = _pad2(w1t, Dp, Hp).astype(compute_dtype)
    w3p = _pad2(w3t, Dp, Hp).astype(compute_dtype)
    b1p = _pad2(b1, 1, Hp).astype(jnp.float32)
    b3p = _pad2(b3, 1, Hp).astype(jnp.float32)

    # Block-interleave per hidden tile: columns [h*2*th, h*2*th+th) = W1 tile,
    # [h*2*th+th, (h+1)*2*th) = W3 tile.
    w13 = jnp.concatenate(
        [w1p.reshape(Dp, n_h, th_eff), w3p.reshape(Dp, n_h, th_eff)], axis=2
    ).reshape(Dp, n_h * 2 * th_eff)
    b13 = jnp.concatenate(
        [b1p.reshape(1, n_h, th_eff), b3p.reshape(1, n_h, th_eff)], axis=2
    ).reshape(1, n_h * 2 * th_eff)

    w2p = _pad2(w2t, Hp, Op).astype(compute_dtype)
    b2p = _pad2(b2, 1, Op).astype(jnp.float32)

    arrays = (w13, b13, w2p, b2p)
    meta = (dim, out_dim, th_eff)  # static per-layer metadata
    return arrays, meta


def pack_model_params(params, *, th=512, compute_dtype=jnp.bfloat16):
    # TODO(synk): generation-aware weight quantization (int8 on v5e/v6e, fp8 e4m3
    # on v7x) with per-channel scales applied in the f32 epilogue.
    packed, meta = [], []
    for (w1t, b1, w3t, b3, w2t, b2) in params:
        a, m = pack_layer_params(w1t, b1, w3t, b3, w2t, b2, th=th,
                                 compute_dtype=compute_dtype)
        packed.append(a)
        meta.append(m)
    # Check the bf16 layer handoff invariant: padded Op of layer l == padded Dp of l+1.
    for l in range(len(packed) - 1):
        assert packed[l][2].shape[1] == packed[l + 1][0].shape[0], \
            "padded layer widths must chain for the bf16 handoff"
    return tuple(packed), tuple(meta)


# ---------------------------------------------------------------------------
# Full model forward.
# ---------------------------------------------------------------------------
@functools.partial(jax.jit,
                   static_argnames=("meta", "tm", "vmem_limit_bytes", "n_cores"))
def glu_ffn_model(x, layer_params, *, meta, tm=256,
                  vmem_limit_bytes=64 * 1024 * 1024, n_cores=1):
    """Sequential GLU FFN layers, each a Pallas call with bf16 layer handoff.

    x: (M, dim) float32. `meta` is a tuple of (in_dim, out_dim, th_eff) per layer.
    """
    M, dim0 = x.shape
    in_dtype = x.dtype
    n_layers = len(layer_params)

    # Token tile: <= tm, multiple of 8, and guarantee >= n_cores token tiles so
    # both v7x TensorCores get work on the "parallel" grid axis.
    tm_eff = max(8, min(tm, _round_up(pl.cdiv(M, max(n_cores, 1)), 8)))
    Mp = _round_up(M, tm_eff)

    # Pad/cast the input once; every subsequent layer consumes the previous layer's
    # padded bf16 output directly (no per-layer wrapper slice/pad/cast).
    Dp0 = layer_params[0][0].shape[0]
    xp = jnp.pad(x.astype(jnp.float32),
                 ((0, Mp - M), (0, Dp0 - dim0))).astype(jnp.bfloat16)

    for li, ((w13, b13, w2p, b2p), (_in_dim, _out_dim, th_eff)) in enumerate(
            zip(layer_params, meta)):
        assert xp.shape[1] == w13.shape[0]
        last = li == n_layers - 1
        # Intermediate layers emit bf16 (the reference casts to bf16 at the next
        # layer's MXU input anyway); the last layer emits f32 like the reference.
        out_dtype = jnp.float32 if last else jnp.bfloat16
        xp = glu_ffn_layer(xp, w13, b13, w2p, b2p,
                           tm=tm_eff, th=th_eff, out_dtype=out_dtype,
                           vmem_limit_bytes=vmem_limit_bytes)

    out_dim_last = meta[-1][1]
    return xp[:M, :out_dim_last].astype(in_dtype)


def reference_model(x, params, compute_dtype=jnp.bfloat16):
    """Pure-JAX reference mirroring the PyTorch forward (same bf16 MXU casts)."""
    x = x.astype(jnp.float32)
    for (w1t, b1, w3t, b3, w2t, b2) in params:
        xc = x.astype(compute_dtype)
        h1 = jnp.dot(xc, w1t.astype(compute_dtype),
                     preferred_element_type=jnp.float32) + b1
        h3 = jnp.dot(xc, w3t.astype(compute_dtype),
                     preferred_element_type=jnp.float32) + b3
        g = (jax.nn.silu(h1) * h3).astype(compute_dtype)
        x = jnp.dot(g, w2t.astype(compute_dtype),
                    preferred_element_type=jnp.float32) + b2
    return x


if __name__ == "__main__":
    # Small shapes consistent with the module: batch=2, seq=8 tokens, dim=32,
    # hidden_dim=64, out_dim=32, n_layers=2, bias=True, act='silu'.
    batch, seq = 2, 8
    dim, hidden_dim, out_dim = 32, 64, 32
    n_layers = 2
    bias = True

    key = jax.random.PRNGKey(0)
    key, kx = jax.random.split(key)

    x3d = jax.random.normal(kx, (batch, seq, dim), dtype=jnp.float32)
    x = x3d.reshape(batch * seq, dim)

    cfg = tpu_tiling_defaults()
    raw_params = init_model_params(key, dim, hidden_dim, out_dim, n_layers, bias)
    packed_params, meta = pack_model_params(raw_params, th=cfg["th"])

    out = glu_ffn_model(x, packed_params, meta=meta, tm=cfg["tm"],
                        vmem_limit_bytes=cfg["vmem_limit_bytes"],
                        n_cores=cfg["n_cores"])
    out = jax.block_until_ready(out)

    ref = reference_model(x, raw_params)
    assert out.shape == (batch * seq, out_dim)
    max_err = float(jnp.max(jnp.abs(out - ref)))
    assert jnp.allclose(out, ref, atol=2e-3, rtol=2e-3), \
        f"mismatch vs reference (max abs err {max_err})"

    print("KERNEL_OK")
</pallas_src>

<mosaic_0001>
module attributes {stable_mosaic.version = 11 : i64} {
  func.func @glu_ffn_kernel(%arg0: i32, %arg1: i32, %arg2: memref<16x128xbf16, #tpu.memory_space<vmem>>, %arg3: memref<128x256xbf16, #tpu.memory_space<vmem>>, %arg4: memref<1x256xf32, #tpu.memory_space<vmem>>, %arg5: memref<128x128xbf16, #tpu.memory_space<vmem>>, %arg6: memref<1x128xf32, #tpu.memory_space<vmem>>, %arg7: memref<16x128xf32, #tpu.memory_space<vmem>>, %arg8: memref<16x128xf32, #tpu.memory_space<vmem>>) attributes {dimension_semantics = [#tpu.dimension_semantics<parallel>, #tpu.dimension_semantics<arbitrary>], iteration_bounds = array<i64: 1, 1>, scalar_prefetch = 0 : i64, scratch_operands = 1 : i64, tpu.core_type = #tpu.core_type<tc>, window_params = [{transform_indices = @transform_0, window_bounds = array<i64: 16, 128>}, {transform_indices = @transform_1, window_bounds = array<i64: 128, 256>}, {transform_indices = @transform_2, window_bounds = array<i64: 1, 256>}, {transform_indices = @transform_3, window_bounds = array<i64: 128, 128>}, {pipeline_mode = #tpu.pipeline_mode<synchronous>, transform_indices = @transform_4, window_bounds = array<i64: 1, 128>}, {transform_indices = @transform_5, window_bounds = array<i64: 16, 128>}]} {
    %c0_i32 = arith.constant 0 : i32
    %0 = arith.cmpi eq, %arg1, %c0_i32 : i32
    %1 = arith.extui %0 : i1 to i32
    %c0_i32_0 = arith.constant 0 : i32
    %2 = arith.cmpi ne, %1, %c0_i32_0 : i32
    scf.if %2 {
      %cst_16 = arith.constant 0.000000e+00 : f32
      %27 = vector.broadcast %cst_16 : f32 to vector<16x128xf32>
      %c0_17 = arith.constant 0 : index
      %c0_18 = arith.constant 0 : index
      %28 = vector.load %arg8[%c0_17, %c0_18] : memref<16x128xf32, #tpu.memory_space<vmem>>, vector<16x128xf32>
      tpu.vector_store %arg8[%c0_17, %c0_18], %27 {strides = array<i32>} : memref<16x128xf32, #tpu.memory_space<vmem>>, vector<16x128xf32>,
    } else {
    }
    %c0 = arith.constant 0 : index
    %c0_1 = arith.constant 0 : index
    %3 = vector.load %arg2[%c0, %c0_1] : memref<16x128xbf16, #tpu.memory_space<vmem>>, vector<16x128xbf16>
    %c0_2 = arith.constant 0 : index
    %c0_3 = arith.constant 0 : index
    %4 = vector.load %arg3[%c0_2, %c0_3] : memref<128x256xbf16, #tpu.memory_space<vmem>>, vector<128x256xbf16>
    %cst = arith.constant dense<0.000000e+00> : vector<16x256xf32>
    %5 = tpu.matmul %3, %4, %cst {dimension_numbers = #tpu.dot_dimension_numbers<[1], [0], [0], [1], [0, 0, 1, 1], [], []>} : vector<16x128xbf16>, vector<128x256xbf16>, vector<16x256xf32> -> vector<16x256xf32>
    %c0_4 = arith.constant 0 : index
    %c0_5 = arith.constant 0 : index
    %6 = vector.load %arg4[%c0_4, %c0_5] : memref<1x256xf32, #tpu.memory_space<vmem>>, vector<1x256xf32>
    %7 = vector.broadcast %6 : vector<1x256xf32> to vector<16x256xf32>
    %8 = arith.addf %5, %7 : vector<16x256xf32>
    %9 = vector.extract_strided_slice %8 {offsets = [0, 0], sizes = [16, 128], strides = [1, 1]} : vector<16x256xf32> to vector<16x128xf32>
    %10 = vector.extract_strided_slice %8 {offsets = [0, 128], sizes = [16, 128], strides = [1, 1]} : vector<16x256xf32> to vector<16x128xf32>
    %11 = arith.negf %9 : vector<16x128xf32>
    %12 = math.exp %11 : vector<16x128xf32>
    %cst_6 = arith.constant 1.000000e+00 : f32
    %13 = vector.broadcast %cst_6 : f32 to vector<16x128xf32>
    %14 = arith.addf %13, %12 : vector<16x128xf32>
    %15 = arith.divf %13, %14 : vector<16x128xf32>
    %16 = arith.mulf %9, %15 : vector<16x128xf32>
    %17 = arith.mulf %16, %10 : vector<16x128xf32>
    %c0_7 = arith.constant 0 : index
    %c0_8 = arith.constant 0 : index
    %18 = vector.load %arg8[%c0_7, %c0_8] : memref<16x128xf32, #tpu.memory_space<vmem>>, vector<16x128xf32>
    %19 = arith.truncf %17 : vector<16x128xf32> to vector<16x128xbf16>
    %c0_9 = arith.constant 0 : index
    %c0_10 = arith.constant 0 : index
    %20 = vector.load %arg5[%c0_9, %c0_10] : memref<128x128xbf16, #tpu.memory_space<vmem>>, vector<128x128xbf16>
    %cst_11 = arith.constant dense<0.000000e+00> : vector<16x128xf32>
    %21 = tpu.matmul %19, %20, %cst_11 {dimension_numbers = #tpu.dot_dimension_numbers<[1], [0], [0], [1], [0, 0, 1, 1], [], []>} : vector<16x128xbf16>, vector<128x128xbf16>, vector<16x128xf32> -> vector<16x128xf32>
    %22 = arith.addf %18, %21 : vector<16x128xf32>
    %c0_12 = arith.constant 0 : index
    %c0_13 = arith.constant 0 : index
    %23 = vector.load %arg8[%c0_12, %c0_13] : memref<16x128xf32, #tpu.memory_space<vmem>>, vector<16x128xf32>
    tpu.vector_store %arg8[%c0_12, %c0_13], %22 {strides = array<i32>} : memref<16x128xf32, #tpu.memory_space<vmem>>, vector<16x128xf32>,
    %c0_i32_14 = arith.constant 0 : i32
    %24 = arith.cmpi eq, %arg1, %c0_i32_14 : i32
    %25 = arith.extui %24 : i1 to i32
    %c0_i32_15 = arith.constant 0 : i32
    %26 = arith.cmpi ne, %25, %c0_i32_15 : i32
    scf.if %26 {
      %c0_16 = arith.constant 0 : index
      %c0_17 = arith.constant 0 : index
      %27 = vector.load %arg8[%c0_16, %c0_17] : memref<16x128xf32, #tpu.memory_space<vmem>>, vector<16x128xf32>
      %c0_18 = arith.constant 0 : index
      %c0_19 = arith.constant 0 : index
      %28 = vector.load %arg6[%c0_18, %c0_19] : memref<1x128xf32, #tpu.memory_space<vmem>>, vector<1x128xf32>
      %29 = vector.broadcast %28 : vector<1x128xf32> to vector<16x128xf32>
      %30 = arith.addf %27, %29 : vector<16x128xf32>
      %c0_20 = arith.constant 0 : index
      %c0_21 = arith.constant 0 : index
      %31 = vector.load %arg7[%c0_20, %c0_21] : memref<16x128xf32, #tpu.memory_space<vmem>>, vector<16x128xf32>
      tpu.vector_store %arg7[%c0_20, %c0_21], %30 {strides = array<i32>} : memref<16x128xf32, #tpu.memory_space<vmem>>, vector<16x128xf32>,
    } else {
    }
    return
  }
  func.func @transform_0(%arg0: i32, %arg1: i32) -> (i32, i32) {
    %c0_i32 = arith.constant 0 : i32
    %c0_i32_0 = arith.constant 0 : i32
    return %arg0, %c0_i32 : i32, i32
  }
  func.func @transform_1(%arg0: i32, %arg1: i32) -> (i32, i32) {
    %c0_i32 = arith.constant 0 : i32
    %c0_i32_0 = arith.constant 0 : i32
    return %c0_i32, %arg1 : i32, i32
  }
  func.func @transform_2(%arg0: i32, %arg1: i32) -> (i32, i32) {
    %c0_i32 = arith.constant 0 : i32
    %c0_i32_0 = arith.constant 0 : i32
    return %c0_i32, %arg1 : i32, i32
  }
  func.func @transform_3(%arg0: i32, %arg1: i32) -> (i32, i32) {
    %c0_i32 = arith.constant 0 : i32
    %c0_i32_0 = arith.constant 0 : i32
    return %arg1, %c0_i32 : i32, i32
  }
  func.func @transform_4(%arg0: i32, %arg1: i32) -> (i32, i32) {
    %c0_i32 = arith.constant 0 : i32
    %c0_i32_0 = arith.constant 0 : i32
    %c0_i32_1 = arith.constant 0 : i32
    return %c0_i32, %c0_i32_0 : i32, i32
  }
  func.func @transform_5(%arg0: i32, %arg1: i32) -> (i32, i32) {
    %c0_i32 = arith.constant 0 : i32
    %c0_i32_0 = arith.constant 0 : i32
    return %arg0, %c0_i32 : i32, i32
  }
}

module attributes {stable_mosaic.version = 11 : i64} {
  func.func @glu_ffn_kernel(%arg0: i32, %arg1: i32, %arg2: memref<16x128xbf16, #tpu.memory_space<vmem>>, %arg3: memref<128x256xbf16, #tpu.memory_space<vmem>>, %arg4: memref<1x256xf32, #tpu.memory_space<vmem>>, %arg5: memref<128x128xbf16, #tpu.memory_space<vmem>>, %arg6: memref<1x128xf32, #tpu.memory_space<vmem>>, %arg7: memref<16x128xbf16, #tpu.memory_space<vmem>>, %arg8: memref<16x128xf32, #tpu.memory_space<vmem>>) attributes {dimension_semantics = [#tpu.dimension_semantics<parallel>, #tpu.dimension_semantics<arbitrary>], iteration_bounds = array<i64: 1, 1>, scalar_prefetch = 0 : i64, scratch_operands = 1 : i64, tpu.core_type = #tpu.core_type<tc>, window_params = [{transform_indices = @transform_0, window_bounds = array<i64: 16, 128>}, {transform_indices = @transform_1, window_bounds = array<i64: 128, 256>}, {transform_indices = @transform_2, window_bounds = array<i64: 1, 256>}, {transform_indices = @transform_3, window_bounds = array<i64: 128, 128>}, {pipeline_mode = #tpu.pipeline_mode<synchronous>, transform_indices = @transform_4, window_bounds = array<i64: 1, 128>}, {transform_indices = @transform_5, window_bounds = array<i64: 16, 128>}]} {
    %c0_i32 = arith.constant 0 : i32
    %0 = arith.cmpi eq, %arg1, %c0_i32 : i32
    %1 = arith.extui %0 : i1 to i32
    %c0_i32_0 = arith.constant 0 : i32
    %2 = arith.cmpi ne, %1, %c0_i32_0 : i32
    scf.if %2 {
      %cst_16 = arith.constant 0.000000e+00 : f32
      %27 = vector.broadcast %cst_16 : f32 to vector<16x128xf32>
      %c0_17 = arith.constant 0 : index
      %c0_18 = arith.constant 0 : index
      %28 = vector.load %arg8[%c0_17, %c0_18] : memref<16x128xf32, #tpu.memory_space<vmem>>, vector<16x128xf32>
      tpu.vector_store %arg8[%c0_17, %c0_18], %27 {strides = array<i32>} : memref<16x128xf32, #tpu.memory_space<vmem>>, vector<16x128xf32>,
    } else {
    }
    %c0 = arith.constant 0 : index
    %c0_1 = arith.constant 0 : index
    %3 = vector.load %arg2[%c0, %c0_1] : memref<16x128xbf16, #tpu.memory_space<vmem>>, vector<16x128xbf16>
    %c0_2 = arith.constant 0 : index
    %c0_3 = arith.constant 0 : index
    %4 = vector.load %arg3[%c0_2, %c0_3] : memref<128x256xbf16, #tpu.memory_space<vmem>>, vector<128x256xbf16>
    %cst = arith.constant dense<0.000000e+00> : vector<16x256xf32>
    %5 = tpu.matmul %3, %4, %cst {dimension_numbers = #tpu.dot_dimension_numbers<[1], [0], [0], [1], [0, 0, 1, 1], [], []>} : vector<16x128xbf16>, vector<128x256xbf16>, vector<16x256xf32> -> vector<16x256xf32>
    %c0_4 = arith.constant 0 : index
    %c0_5 = arith.constant 0 : index
    %6 = vector.load %arg4[%c0_4, %c0_5] : memref<1x256xf32, #tpu.memory_space<vmem>>, vector<1x256xf32>
    %7 = vector.broadcast %6 : vector<1x256xf32> to vector<16x256xf32>
    %8 = arith.addf %5, %7 : vector<16x256xf32>
    %9 = vector.extract_strided_slice %8 {offsets = [0, 0], sizes = [16, 128], strides = [1, 1]} : vector<16x256xf32> to vector<16x128xf32>
    %10 = vector.extract_strided_slice %8 {offsets = [0, 128], sizes = [16, 128], strides = [1, 1]} : vector<16x256xf32> to vector<16x128xf32>
    %11 = arith.negf %9 : vector<16x128xf32>
    %12 = math.exp %11 : vector<16x128xf32>
    %cst_6 = arith.constant 1.000000e+00 : f32
    %13 = vector.broadcast %cst_6 : f32 to vector<16x128xf32>
    %14 = arith.addf %13, %12 : vector<16x128xf32>
    %15 = arith.divf %13, %14 : vector<16x128xf32>
    %16 = arith.mulf %9, %15 : vector<16x128xf32>
    %17 = arith.mulf %16, %10 : vector<16x128xf32>
    %c0_7 = arith.constant 0 : index
    %c0_8 = arith.constant 0 : index
    %18 = vector.load %arg8[%c0_7, %c0_8] : memref<16x128xf32, #tpu.memory_space<vmem>>, vector<16x128xf32>
    %19 = arith.truncf %17 : vector<16x128xf32> to vector<16x128xbf16>
    %c0_9 = arith.constant 0 : index
    %c0_10 = arith.constant 0 : index
    %20 = vector.load %arg5[%c0_9, %c0_10] : memref<128x128xbf16, #tpu.memory_space<vmem>>, vector<128x128xbf16>
    %cst_11 = arith.constant dense<0.000000e+00> : vector<16x128xf32>
    %21 = tpu.matmul %19, %20, %cst_11 {dimension_numbers = #tpu.dot_dimension_numbers<[1], [0], [0], [1], [0, 0, 1, 1], [], []>} : vector<16x128xbf16>, vector<128x128xbf16>, vector<16x128xf32> -> vector<16x128xf32>
    %22 = arith.addf %18, %21 : vector<16x128xf32>
    %c0_12 = arith.constant 0 : index
    %c0_13 = arith.constant 0 : index
    %23 = vector.load %arg8[%c0_12, %c0_13] : memref<16x128xf32, #tpu.memory_space<vmem>>, vector<16x128xf32>
    tpu.vector_store %arg8[%c0_12, %c0_13], %22 {strides = array<i32>} : memref<16x128xf32, #tpu.memory_space<vmem>>, vector<16x128xf32>,
    %c0_i32_14 = arith.constant 0 : i32
    %24 = arith.cmpi eq, %arg1, %c0_i32_14 : i32
    %25 = arith.extui %24 : i1 to i32
    %c0_i32_15 = arith.constant 0 : i32
    %26 = arith.cmpi ne, %25, %c0_i32_15 : i32
    scf.if %26 {
      %c0_16 = arith.constant 0 : index
      %c0_17 = arith.constant 0 : index
      %27 = vector.load %arg8[%c0_16, %c0_17] : memref<16x128xf32, #tpu.memory_space<vmem>>, vector<16x128xf32>
      %c0_18 = arith.constant 0 : index
      %c0_19 = arith.constant 0 : index
      %28 = vector.load %arg6[%c0_18, %c0_19] : memref<1x128xf32, #tpu.memory_space<vmem>>, vector<1x128xf32>
      %29 = vector.broadcast %28 : vector<1x128xf32> to vector<16x128xf32>
      %30 = arith.addf %27, %29 : vector<16x128xf32>
      %31 = arith.truncf %30 : vector<16x128xf32> to vector<16x128xbf16>
      %c0_20 = arith.constant 0 : index
      %c0_21 = arith.constant 0 : index
      %32 = vector.load %arg7[%c0_20, %c0_21] : memref<16x128xbf16, #tpu.memory_space<vmem>>, vector<16x128xbf16>
      tpu.vector_store %arg7[%c0_20, %c0_21], %31 {strides = array<i32>} : memref<16x128xbf16, #tpu.memory_space<vmem>>, vector<16x128xbf16>,
    } else {
    }
    return
  }
  func.func @transform_0(%arg0: i32, %arg1: i32) -> (i32, i32) {
    %c0_i32 = arith.constant 0 : i32
    %c0_i32_0 = arith.constant 0 : i32
    return %arg0, %c0_i32 : i32, i32
  }
  func.func @transform_1(%arg0: i32, %arg1: i32) -> (i32, i32) {
    %c0_i32 = arith.constant 0 : i32
    %c0_i32_0 = arith.constant 0 : i32
    return %c0_i32, %arg1 : i32, i32
  }
  func.func @transform_2(%arg0: i32, %arg1: i32) -> (i32, i32) {
    %c0_i32 = arith.constant 0 : i32
    %c0_i32_0 = arith.constant 0 : i32
    return %c0_i32, %arg1 : i32, i32
  }
  func.func @transform_3(%arg0: i32, %arg1: i32) -> (i32, i32) {
    %c0_i32 = arith.constant 0 : i32
    %c0_i32_0 = arith.constant 0 : i32
    return %arg1, %c0_i32 : i32, i32
  }
  func.func @transform_4(%arg0: i32, %arg1: i32) -> (i32, i32) {
    %c0_i32 = arith.constant 0 : i32
    %c0_i32_0 = arith.constant 0 : i32
    %c0_i32_1 = arith.constant 0 : i32
    return %c0_i32, %c0_i32_0 : i32, i32
  }
  func.func @transform_5(%arg0: i32, %arg1: i32) -> (i32, i32) {
    %c0_i32 = arith.constant 0 : i32
    %c0_i32_0 = arith.constant 0 : i32
    return %arg0, %c0_i32 : i32, i32
  }
}

</mosaic_0001>

<llo_original>
// kernel: glu_ffn_model.2
$region0: #{glu_ffn_model.2}
  #allocation0 [shape = 'u32[]', space=smem, size = 0x4, offset = 0x4, fixed_abs, tag = 'smem constant byte address 0x4 - core index']
  #allocation1 [shape = 'u32[144,128]{1,0:T(1,128)}', space=vmem, size = 0x12000, scoped, tag = 'internal scratch']
  #allocation2 [shape = 'f32[16,128]{1,0:T(8,128)}', space=vmem, size = 0x2000, scoped, tag = 'scratch operand']
  %s0 = inlined_call_operand.hbm [shape: bf16[16,128], index: 0, kind: input, shape index: {}]
  %s1 = inlined_call_operand.hbm [shape: bf16[128,256], index: 1, kind: input, shape index: {}]
  %s2 = inlined_call_operand.hbm [shape: f32[1,256], index: 2, kind: input, shape index: {}]
  %s3 = inlined_call_operand.hbm [shape: bf16[128,128], index: 3, kind: input, shape index: {}]
  %s4 = inlined_call_operand.hbm [shape: f32[1,128], index: 4, kind: input, shape index: {}]
  %s5 = inlined_call_operand.hbm [shape: bf16[16,128], index: 5, kind: output, shape index: {}]
  %s6 = sld [smem:[#allocation0]]
  $region58: #{glu_ffn_model.2} parent=0
    _
  %s8 = ssub.s32 1, %s6
  %s9 = scalar_select 0, %s8, %s6
  $region1: #{glu_ffn_model.2} parent=0
    #allocation3 [shape = 'u8[4096]{0}', space=vmem, size = 0x1000, scoped, tag = 'input window, operand 0, single buffered']
    #allocation4 [shape = 's32[1]{0}', space=sflag, size = 0x4, scoped, tag = 'scoped memory for glu_ffn_model.2']
    #allocation5 [shape = 's32[1]{0}', space=sflag, size = 0x4, scoped, tag = 'scoped memory for glu_ffn_model.2']
    #allocation6 [shape = 'u8[65536]{0}', space=vmem, size = 0x10000, scoped, tag = 'input window, operand 1, single buffered']
    #allocation7 [shape = 's32[1]{0}', space=sflag, size = 0x4, scoped, tag = 'scoped memory for glu_ffn_model.2']
    #allocation8 [shape = 'u8[1024]{0}', space=vmem, size = 0x400, scoped, tag = 'input window, operand 2, single buffered']
    #allocation9 [shape = 'u8[32768]{0}', space=vmem, size = 0x8000, scoped, tag = 'input window, operand 3, single buffered']
    #allocation10 [shape = 's32[1]{0}', space=sflag, size = 0x4, scoped, tag = 'scoped memory for glu_ffn_model.2']
    #allocation11 [shape = 'u8[512]{0}', space=vmem, size = 0x400, scoped, tag = 'input window, operand 4, single buffered']
    #allocation12 [shape = 'u8[4096]{0}', space=vmem, size = 0x1000, scoped, tag = 'output window, operand 0, single buffered']
    %10 = vsyncpa [#allocation4], 0
    %11 = vsyncpa [#allocation7], 0
    %12 = vsyncpa [#allocation10], 0
    %13 = vsyncpa [#allocation5], 0
    // Predicated region
    $region2: #{glu_ffn_model.2} parent=1 // pred_check
      _
    $region3: #{glu_ffn_model.2} parent=1 // pred_check_branch
      %15 = sbr.rel (0) target = $region5
    $region4: #{glu_ffn_model.2} parent=1 // pred_region
      %s17 = ssub.s32 128, 128
      %18 = vsyncadd [#allocation4], %s17
      %s19 = sshll.u32 [#allocation3], 4
      %s20 = int_to_ptr.vmem [resolvable:$true] %s19
      %25 = dma.hbm_to_vmem [thread:$0]  %s0, 128, %s20, [#allocation4], 64, 64, 4
    $region5: #{glu_ffn_model.2} parent=1 // pred_fallthru
      _
    // Predicated region
    $region6: #{glu_ffn_model.2} parent=1 // pred_check
      _
    $region7: #{glu_ffn_model.2} parent=1 // pred_check_branch
      %27 = sbr.rel (0) target = $region9
    $region8: #{glu_ffn_model.2} parent=1 // pred_region
      %s29 = ssub.s32 2048, 2048
      %30 = vsyncadd [#allocation7], %s29
      %s31 = sshll.u32 [#allocation6], 4
      %s32 = int_to_ptr.vmem [resolvable:$true] %s31
      %37 = dma.hbm_to_vmem [thread:$0]  %s1, 2048, %s32, [#allocation7], 128, 128, 8
    $region9: #{glu_ffn_model.2} parent=1 // pred_fallthru
      _
    // Predicated region
    $region10: #{glu_ffn_model.2} parent=1 // pred_check
      _
    $region11: #{glu_ffn_model.2} parent=1 // pred_check_branch
      %39 = sbr.rel (0) target = $region13
    $region12: #{glu_ffn_model.2} parent=1 // pred_region
      %s41 = ssub.s32 32, 32
      %42 = vsyncadd [#allocation7], %s41
      %s44 = sshll.u32 [#allocation8], 4
      %s45 = int_to_ptr.vmem [resolvable:$true] %s44
      %47 = dma.hbm_to_vmem [thread:$0]  %s2, 32, %s45, [#allocation7]
    $region13: #{glu_ffn_model.2} parent=1 // pred_fallthru
      _
    // Predicated region
    $region14: #{glu_ffn_model.2} parent=1 // pred_check
      _
    $region15: #{glu_ffn_model.2} parent=1 // pred_check_branch
      %49 = sbr.rel (0) target = $region17
    $region16: #{glu_ffn_model.2} parent=1 // pred_region
      %s51 = ssub.s32 1024, 1024
      %52 = vsyncadd [#allocation10], %s51
      %s53 = sshll.u32 [#allocation9], 4
      %s54 = int_to_ptr.vmem [resolvable:$true] %s53
      %59 = dma.hbm_to_vmem [thread:$0]  %s3, 1024, %s54, [#allocation10], 64, 64, 4
    $region17: #{glu_ffn_model.2} parent=1 // pred_fallthru
      _
    // Predicated region
    $region18: #{glu_ffn_model.2} parent=1 // pred_check
      _
    $region19: #{glu_ffn_model.2} parent=1 // pred_check_branch
      %61 = sbr.rel (0) target = $region21
    $region20: #{glu_ffn_model.2} parent=1 // pred_region
      %s63 = ssub.s32 16, 16
      %64 = vsyncadd [#allocation10], %s63
      %s66 = sshll.u32 [#allocation11], 4
      %s67 = int_to_ptr.vmem [resolvable:$true] %s66
      %69 = dma.hbm_to_vmem [thread:$0]  %s4, 16, %s67, [#allocation10]
    $region21: #{glu_ffn_model.2} parent=1 // pred_fallthru
      _
    // Predicated region
    $region22: #{glu_ffn_model.2} parent=1 // pred_check
      _
    $region23: #{glu_ffn_model.2} parent=1 // pred_check_branch
      %71 = sbr.rel (0) target = $region25
    $region24: #{glu_ffn_model.2} parent=1 // pred_region
      %72 = dma.done [#allocation4], 128
    $region25: #{glu_ffn_model.2} parent=1 // pred_fallthru
      _
    // Predicated region
    $region26: #{glu_ffn_model.2} parent=1 // pred_check
      _
    $region27: #{glu_ffn_model.2} parent=1 // pred_check_branch
      %74 = sbr.rel (0) target = $region29
    $region28: #{glu_ffn_model.2} parent=1 // pred_region
      %75 = dma.done [#allocation7], 2048
    $region29: #{glu_ffn_model.2} parent=1 // pred_fallthru
      _
    // Predicated region
    $region30: #{glu_ffn_model.2} parent=1 // pred_check
      _
    $region31: #{glu_ffn_model.2} parent=1 // pred_check_branch
      %77 = sbr.rel (0) target = $region33
    $region32: #{glu_ffn_model.2} parent=1 // pred_region
      %78 = dma.done [#allocation7], 32
    $region33: #{glu_ffn_model.2} parent=1 // pred_fallthru
      _
    // Predicated region
    $region34: #{glu_ffn_model.2} parent=1 // pred_check
      _
    $region35: #{glu_ffn_model.2} parent=1 // pred_check_branch
      %80 = sbr.rel (0) target = $region37
    $region36: #{glu_ffn_model.2} parent=1 // pred_region
      %81 = dma.done [#allocation10], 1024
    $region37: #{glu_ffn_model.2} parent=1 // pred_fallthru
      _
    // Predicated region
    $region38: #{glu_ffn_model.2} parent=1 // pred_check
      _
    $region39: #{glu_ffn_model.2} parent=1 // pred_check_branch
      %83 = sbr.rel (0) target = $region41
    $region40: #{glu_ffn_model.2} parent=1 // pred_region
      %84 = dma.done [#allocation10], 16
    $region41: #{glu_ffn_model.2} parent=1 // pred_fallthru
      _
    %p86 = scmp.eq.s32.totalorder 0, 0
    // Predicated region
    $region42: #{glu_ffn_model.2} parent=1 // pred_check
      %p87 = pneg %p86
    $region43: #{glu_ffn_model.2} parent=1 // pred_check_branch
      %89 = sbr.rel (%p87) target = $region45
    $region44: #{glu_ffn_model.2} parent=1 // pred_region
      %90 = vst [vmem:[#allocation2] sm:$0xff] 0.0
      %91 = vst [vmem:[#allocation2 + $0x8] sm:$0xff] 0.0
    $region45: #{glu_ffn_model.2} parent=1 // pred_fallthru
      _
    %v92 = vld [vmem:[#allocation3] sm:$0xf]
    %v93 = vld [vmem:[#allocation3 + $0x4] sm:$0xf]
    %v94 = vld [vmem:[#allocation6] sm:$0xff]
    %v95 = vld [vmem:[#allocation6 + $0x8] sm:$0xff]
    %v96 = vld [vmem:[#allocation6 + $0x10] sm:$0xff]
    %v97 = vld [vmem:[#allocation6 + $0x18] sm:$0xff]
    %v98 = vld [vmem:[#allocation6 + $0x20] sm:$0xff]
    %v99 = vld [vmem:[#allocation6 + $0x28] sm:$0xff]
    %v100 = vld [vmem:[#allocation6 + $0x30] sm:$0xff]
    %v101 = vld [vmem:[#allocation6 + $0x38] sm:$0xff]
    %v102 = vld [vmem:[#allocation6 + $0x40] sm:$0xff]
    %v103 = vld [vmem:[#allocation6 + $0x48] sm:$0xff]
    %v104 = vld [vmem:[#allocation6 + $0x50] sm:$0xff]
    %v105 = vld [vmem:[#allocation6 + $0x58] sm:$0xff]
    %v106 = vld [vmem:[#allocation6 + $0x60] sm:$0xff]
    %v107 = vld [vmem:[#allocation6 + $0x68] sm:$0xff]
    %v108 = vld [vmem:[#allocation6 + $0x70] sm:$0xff]
    %v109 = vld [vmem:[#allocation6 + $0x78] sm:$0xff]
    %v110 = vld [vmem:[#allocation8] sm:$0x3]
    %v112 = vlaneseq
    %v113 = vshrl.u32 %v112, 7
    %v114 = vsub.s32 0, %v113
    %v115 = vrot.slane %v110, %v114
    %v116 = vlaneseq
    %v117 = vshrl.u32 %v116, 7
    %v118 = vsub.s32 1, %v117
    %v119 = vrot.slane %v110, %v118
    %v124 = vunpack.c.l.b16 %v92
    %v125 = vunpack.c.l.b16 %v93
    %v126 = vpack.c.b16 %v125, %v124
    %v144 = vunpack.c.l.b16 %v94
    %v145 = vunpack.c.h.b16 %v94
    %v146 = vunpack.c.l.b16 %v95
    %v147 = vunpack.c.h.b16 %v95
    %v148 = vunpack.c.l.b16 %v96
    %v149 = vunpack.c.h.b16 %v96
    %v150 = vunpack.c.l.b16 %v97
    %v151 = vunpack.c.h.b16 %v97
    %v152 = vunpack.c.l.b16 %v98
    %v153 = vunpack.c.h.b16 %v98
    %v154 = vunpack.c.l.b16 %v99
    %v155 = vunpack.c.h.b16 %v99
    %v156 = vunpack.c.l.b16 %v100
    %v157 = vunpack.c.h.b16 %v100
    %v158 = vunpack.c.l.b16 %v101
    %v159 = vunpack.c.h.b16 %v101
    %v160 = vunpack.c.l.b16 %v102
    %v161 = vunpack.c.h.b16 %v102
    %v162 = vunpack.c.l.b16 %v103
    %v163 = vunpack.c.h.b16 %v103
    %v164 = vunpack.c.l.b16 %v104
    %v165 = vunpack.c.h.b16 %v104
    %v166 = vunpack.c.l.b16 %v105
    %v167 = vunpack.c.h.b16 %v105
    %v168 = vunpack.c.l.b16 %v106
    %v169 = vunpack.c.h.b16 %v106
    %v170 = vunpack.c.l.b16 %v107
    %v171 = vunpack.c.h.b16 %v107
    %v172 = vunpack.c.l.b16 %v108
    %v173 = vunpack.c.h.b16 %v108
    %v174 = vunpack.c.l.b16 %v109
    %v175 = vunpack.c.h.b16 %v109
    %v176 = vpack.c.b16 %v146, %v144
    %v177 = vpack.c.b16 %v147, %v145
    %v178 = vpack.c.b16 %v150, %v148
    %v179 = vpack.c.b16 %v151, %v149
    %v180 = vpack.c.b16 %v154, %v152
    %v181 = vpack.c.b16 %v155, %v153
    %v182 = vpack.c.b16 %v158, %v156
    %v183 = vpack.c.b16 %v159, %v157
    %v184 = vpack.c.b16 %v162, %v160
    %v185 = vpack.c.b16 %v163, %v161
    %v186 = vpack.c.b16 %v166, %v164
    %v187 = vpack.c.b16 %v167, %v165
    %v188 = vpack.c.b16 %v170, %v168
    %v189 = vpack.c.b16 %v171, %v169
    %v190 = vpack.c.b16 %v174, %v172
    %v191 = vpack.c.b16 %v175, %v173
    %208 = vmatprep.subr.bf16.mxu0 %v177
    %209 = vmatpush1.bf16.msra.mxu0 %v176
    %210 = vmatprep.subr.bf16.mxu0 %v179
    %211 = vmatpush1.bf16.msra.mxu0 %v178
    %212 = vmatprep.subr.bf16.mxu0 %v181
    %213 = vmatpush1.bf16.msra.mxu0 %v180
    %214 = vmatprep.subr.bf16.mxu0 %v183
    %215 = vmatpush1.bf16.msra.mxu0 %v182
    %216 = vmatprep.subr.bf16.mxu0 %v185
    %217 = vmatpush1.bf16.msra.mxu0 %v184
    %218 = vmatprep.subr.bf16.mxu0 %v187
    %219 = vmatpush1.bf16.msra.mxu0 %v186
    %220 = vmatprep.subr.bf16.mxu0 %v189
    %221 = vmatpush1.bf16.msra.mxu0 %v188
    %222 = vmatprep.subr.bf16.mxu0 %v191
    %223 = vmatpush1.bf16.msra.mxu0 %v190
    %224 = vmatprep.subr.bf16.mxu0 0
    %225 = vmatpush1.bf16.msra.mxu0 0
    %226 = vmatprep.subr.bf16.mxu0 0
    %227 = vmatpush1.bf16.msra.mxu0 0
    %228 = vmatprep.subr.bf16.mxu0 0
    %229 = vmatpush1.bf16.msra.mxu0 0
    %230 = vmatprep.subr.bf16.mxu0 0
    %231 = vmatpush1.bf16.msra.mxu0 0
    %232 = vmatprep.subr.bf16.mxu0 0
    %233 = vmatpush1.bf16.msra.mxu0 0
    %234 = vmatprep.subr.bf16.mxu0 0
    %235 = vmatpush1.bf16.msra.mxu0 0
    %236 = vmatprep.subr.bf16.mxu0 0
    %237 = vmatpush1.bf16.msra.mxu0 0
    %238 = vmatprep.subr.bf16.mxu0 0
    %239 = vmatpush1.bf16.msra.mxu0 0
    %240 = vmatprep.mubr.bf16.mxu0 0
    %241 = vmatmul.mubr.bf16.gmra.mrb[0].mxu0 %v126
    %v242 = vpop.f32.mrb[0].mxu0
    %v243 = vadd.f32 %v115, %v242
    %v244 = vpop.f32.mrb[0].mxu0
    %v245 = vadd.f32 %v119, %v244
    %v246 = vpop.f32.mrb[0].mxu0
    %v247 = vadd.f32 %v115, %v246
    %v248 = vpop.f32.mrb[0].mxu0
    %v249 = vadd.f32 %v119, %v248
    %250 = vdwg.mxu0
    %v251 = vxor.u32 %v243, 2147483648
    %v252 = vxor.u32 %v247, 2147483648
    %v253 = vmul.f32 %v251, 1.442695
    %v254 = vpow.pop %v253
    %v255 = vmul.f32 %v252, 1.442695
    %v256 = vpow.pop %v255
    %v257 = vadd.f32 %v254, 1.0
    %v258 = vadd.f32 %v256, 1.0
    %v259 = vrcp.pop %v257
    %v260 = vmul.f32 1.0, %v259
    %v261 = vrcp.pop %v258
    %v262 = vmul.f32 1.0, %v261
    %v263 = vmul.f32 %v243, %v260
    %v264 = vmul.f32 %v247, %v262
    %v265 = vmul.f32 %v263, %v245
    %v266 = vmul.f32 %v264, %v249
    %v267 = vld [vmem:[#allocation2] sm:$0xff]
    %v268 = vld [vmem:[#allocation2 + $0x8] sm:$0xff]
    %v269 = vpack.c.bf16 %v266, %v265
    %v270 = vld [vmem:[#allocation9] sm:$0xf]
    %v271 = vld [vmem:[#allocation9 + $0x4] sm:$0xf]
    %v272 = vld [vmem:[#allocation9 + $0x8] sm:$0xf]
    %v273 = vld [vmem:[#allocation9 + $0xc] sm:$0xf]
    %v274 = vld [vmem:[#allocation9 + $0x10] sm:$0xf]
    %v275 = vld [vmem:[#allocation9 + $0x14] sm:$0xf]
    %v276 = vld [vmem:[#allocation9 + $0x18] sm:$0xf]
    %v277 = vld [vmem:[#allocation9 + $0x1c] sm:$0xf]
    %v278 = vld [vmem:[#allocation9 + $0x20] sm:$0xf]
    %v279 = vld [vmem:[#allocation9 + $0x24] sm:$0xf]
    %v280 = vld [vmem:[#allocation9 + $0x28] sm:$0xf]
    %v281 = vld [vmem:[#allocation9 + $0x2c] sm:$0xf]
    %v282 = vld [vmem:[#allocation9 + $0x30] sm:$0xf]
    %v283 = vld [vmem:[#allocation9 + $0x34] sm:$0xf]
    %v284 = vld [vmem:[#allocation9 + $0x38] sm:$0xf]
    %v285 = vld [vmem:[#allocation9 + $0x3c] sm:$0xf]
    %v302 = vunpack.c.l.b16 %v270
    %v303 = vunpack.c.l.b16 %v271
    %v304 = vunpack.c.l.b16 %v272
    %v305 = vunpack.c.l.b16 %v273
    %v306 = vunpack.c.l.b16 %v274
    %v307 = vunpack.c.l.b16 %v275
    %v308 = vunpack.c.l.b16 %v276
    %v309 = vunpack.c.l.b16 %v277
    %v310 = vunpack.c.l.b16 %v278
    %v311 = vunpack.c.l.b16 %v279
    %v312 = vunpack.c.l.b16 %v280
    %v313 = vunpack.c.l.b16 %v281
    %v314 = vunpack.c.l.b16 %v282
    %v315 = vunpack.c.l.b16 %v283
    %v316 = vunpack.c.l.b16 %v284
    %v317 = vunpack.c.l.b16 %v285
    %v318 = vpack.c.b16 %v303, %v302
    %v319 = vpack.c.b16 %v305, %v304
    %v320 = vpack.c.b16 %v307, %v306
    %v321 = vpack.c.b16 %v309, %v308
    %v322 = vpack.c.b16 %v311, %v310
    %v323 = vpack.c.b16 %v313, %v312
    %v324 = vpack.c.b16 %v315, %v314
    %v325 = vpack.c.b16 %v317, %v316
    %334 = vmatprep.subr.bf16.mxu0 0
    %335 = vmatpush1.bf16.msra.mxu0 %v318
    %336 = vmatprep.subr.bf16.mxu0 0
    %337 = vmatpush1.bf16.msra.mxu0 %v319
    %338 = vmatprep.subr.bf16.mxu0 0
    %339 = vmatpush1.bf16.msra.mxu0 %v320
    %340 = vmatprep.subr.bf16.mxu0 0
    %341 = vmatpush1.bf16.msra.mxu0 %v321
    %342 = vmatprep.subr.bf16.mxu0 0
    %343 = vmatpush1.bf16.msra.mxu0 %v322
    %344 = vmatprep.subr.bf16.mxu0 0
    %345 = vmatpush1.bf16.msra.mxu0 %v323
    %346 = vmatprep.subr.bf16.mxu0 0
    %347 = vmatpush1.bf16.msra.mxu0 %v324
    %348 = vmatprep.subr.bf16.mxu0 0
    %349 = vmatpush1.bf16.msra.mxu0 %v325
    %350 = vmatprep.subr.bf16.mxu0 0
    %351 = vmatpush1.bf16.msra.mxu0 0
    %352 = vmatprep.subr.bf16.mxu0 0
    %353 = vmatpush1.bf16.msra.mxu0 0
    %354 = vmatprep.subr.bf16.mxu0 0
    %355 = vmatpush1.bf16.msra.mxu0 0
    %356 = vmatprep.subr.bf16.mxu0 0
    %357 = vmatpush1.bf16.msra.mxu0 0
    %358 = vmatprep.subr.bf16.mxu0 0
    %359 = vmatpush1.bf16.msra.mxu0 0
    %360 = vmatprep.subr.bf16.mxu0 0
    %361 = vmatpush1.bf16.msra.mxu0 0
    %362 = vmatprep.subr.bf16.mxu0 0
    %363 = vmatpush1.bf16.msra.mxu0 0
    %364 = vmatprep.subr.bf16.mxu0 0
    %365 = vmatpush1.bf16.msra.mxu0 0
    %366 = vmatprep.mubr.bf16.mxu0 0
    %367 = vmatmul.mubr.bf16.gmra.mrb[0].mxu0 %v269
    %v368 = vpop.f32.mrb[0].mxu0
    %v369 = vadd.f32 0.0, %v368
    %v370 = vpop.f32.mrb[0].mxu0
    %v371 = vpop.f32.mrb[0].mxu0
    %v372 = vadd.f32 0.0, %v371
    %v373 = vpop.f32.mrb[0].mxu0
    %374 = vdwg.mxu0
    %v375 = vadd.f32 %v267, %v369
    %v376 = vadd.f32 %v268, %v372
    %377 = vst [vmem:[#allocation2] sm:$0xff] %v375
    %378 = vst [vmem:[#allocation2 + $0x8] sm:$0xff] %v376
    // Predicated region
    $region46: #{glu_ffn_model.2} parent=1 // pred_check
      %p379 = pneg %p86
    $region47: #{glu_ffn_model.2} parent=1 // pred_check_branch
      %381 = sbr.rel (%p379) target = $region49
    $region48: #{glu_ffn_model.2} parent=1 // pred_region
      %v382 = vld [vmem:[#allocation2] sm:$0xff]
      %v383 = vld [vmem:[#allocation2 + $0x8] sm:$0xff]
      %v384 = vld [vmem:[#allocation11] sm:$0x1]
      %v386 = vlaneseq
      %v387 = vshrl.u32 %v386, 7
      %v388 = vsub.s32 0, %v387
      %v389 = vrot.slane %v384, %v388
      %v391 = vadd.f32 %v382, %v389
      %v392 = vadd.f32 %v383, %v389
      %v393 = vpack.c.bf16 %v392, %v391
      %v395 = vunpack.c.l.b16 %v393
      %v396 = vunpack.c.h.b16 %v393
      %v397 = vpack.c.b16 %v395, %v395
      %v398 = vpack.c.b16 %v396, %v396
      %401 = vst [vmem:[#allocation12] sm:$0xf] %v397
      %402 = vst [vmem:[#allocation12 + $0x4] sm:$0xf] %v398
    $region49: #{glu_ffn_model.2} parent=1 // pred_fallthru
      _
    // Predicated region
    $region50: #{glu_ffn_model.2} parent=1 // pred_check
      _
    $region51: #{glu_ffn_model.2} parent=1 // pred_check_branch
      %404 = sbr.rel (0) target = $region53
    $region52: #{glu_ffn_model.2} parent=1 // pred_region
      %s406 = ssub.s32 128, 128
      %407 = vsyncadd [#allocation5], %s406
      %s408 = sshll.u32 [#allocation12], 4
      %s409 = int_to_ptr.vmem [resolvable:$true] %s408
      %414 = dma.vmem_to_hbm [thread:$0]  %s409, 128, %s5, [#allocation5], 64, 64, 4
    $region53: #{glu_ffn_model.2} parent=1 // pred_fallthru
      _
    // Predicated region
    $region54: #{glu_ffn_model.2} parent=1 // pred_check
      _
    $region55: #{glu_ffn_model.2} parent=1 // pred_check_branch
      %416 = sbr.rel (0) target = $region57
    $region56: #{glu_ffn_model.2} parent=1 // pred_region
      %417 = dma.done [#allocation5], 128
    $region57: #{glu_ffn_model.2} parent=1 // pred_fallthru
      _
    %418 = vsyncpa [#allocation4], 1
    %419 = vsyncpa [#allocation7], 1
    %420 = vsyncpa [#allocation10], 1
    %421 = vsyncpa [#allocation5], 1

// kernel: glu_ffn_model.3
$region0: #{glu_ffn_model.3}
  #allocation0 [shape = 'u32[]', space=smem, size = 0x4, offset = 0x4, fixed_abs, tag = 'smem constant byte address 0x4 - core index']
  #allocation1 [shape = 'u32[144,128]{1,0:T(1,128)}', space=vmem, size = 0x12000, scoped, tag = 'internal scratch']
  #allocation2 [shape = 'f32[16,128]{1,0:T(8,128)}', space=vmem, size = 0x2000, scoped, tag = 'scratch operand']
  %s0 = inlined_call_operand.hbm [shape: bf16[16,128], index: 0, kind: input, shape index: {}]
  %s1 = inlined_call_operand.hbm [shape: bf16[128,256], index: 1, kind: input, shape index: {}]
  %s2 = inlined_call_operand.hbm [shape: f32[1,256], index: 2, kind: input, shape index: {}]
  %s3 = inlined_call_operand.hbm [shape: bf16[128,128], index: 3, kind: input, shape index: {}]
  %s4 = inlined_call_operand.hbm [shape: f32[1,128], index: 4, kind: input, shape index: {}]
  %s5 = inlined_call_operand.hbm [shape: f32[16,128], index: 5, kind: output, shape index: {}]
  %s6 = sld [smem:[#allocation0]]
  $region58: #{glu_ffn_model.3} parent=0
    _
  %s8 = ssub.s32 1, %s6
  %s9 = scalar_select 0, %s8, %s6
  $region1: #{glu_ffn_model.3} parent=0
    #allocation3 [shape = 'u8[4096]{0}', space=vmem, size = 0x1000, scoped, tag = 'input window, operand 0, single buffered']
    #allocation4 [shape = 's32[1]{0}', space=sflag, size = 0x4, scoped, tag = 'scoped memory for glu_ffn_model.3']
    #allocation5 [shape = 's32[1]{0}', space=sflag, size = 0x4, scoped, tag = 'scoped memory for glu_ffn_model.3']
    #allocation6 [shape = 'u8[65536]{0}', space=vmem, size = 0x10000, scoped, tag = 'input window, operand 1, single buffered']
    #allocation7 [shape = 's32[1]{0}', space=sflag, size = 0x4, scoped, tag = 'scoped memory for glu_ffn_model.3']
    #allocation8 [shape = 'u8[1024]{0}', space=vmem, size = 0x400, scoped, tag = 'input window, operand 2, single buffered']
    #allocation9 [shape = 'u8[32768]{0}', space=vmem, size = 0x8000, scoped, tag = 'input window, operand 3, single buffered']
    #allocation10 [shape = 's32[1]{0}', space=sflag, size = 0x4, scoped, tag = 'scoped memory for glu_ffn_model.3']
    #allocation11 [shape = 'u8[512]{0}', space=vmem, size = 0x400, scoped, tag = 'input window, operand 4, single buffered']
    #allocation12 [shape = 'u8[8192]{0}', space=vmem, size = 0x2000, scoped, tag = 'output window, operand 0, single buffered']
    %10 = vsyncpa [#allocation4], 0
    %11 = vsyncpa [#allocation7], 0
    %12 = vsyncpa [#allocation10], 0
    %13 = vsyncpa [#allocation5], 0
    // Predicated region
    $region2: #{glu_ffn_model.3} parent=1 // pred_check
      _
    $region3: #{glu_ffn_model.3} parent=1 // pred_check_branch
      %15 = sbr.rel (0) target = $region5
    $region4: #{glu_ffn_model.3} parent=1 // pred_region
      %s17 = ssub.s32 128, 128
      %18 = vsyncadd [#allocation4], %s17
      %s19 = sshll.u32 [#allocation3], 4
      %s20 = int_to_ptr.vmem [resolvable:$true] %s19
      %25 = dma.hbm_to_vmem [thread:$0]  %s0, 128, %s20, [#allocation4], 64, 64, 4
    $region5: #{glu_ffn_model.3} parent=1 // pred_fallthru
      _
    // Predicated region
    $region6: #{glu_ffn_model.3} parent=1 // pred_check
      _
    $region7: #{glu_ffn_model.3} parent=1 // pred_check_branch
      %27 = sbr.rel (0) target = $region9
    $region8: #{glu_ffn_model.3} parent=1 // pred_region
      %s29 = ssub.s32 2048, 2048
      %30 = vsyncadd [#allocation7], %s29
      %s31 = sshll.u32 [#allocation6], 4
      %s32 = int_to_ptr.vmem [resolvable:$true] %s31
      %37 = dma.hbm_to_vmem [thread:$0]  %s1, 2048, %s32, [#allocation7], 128, 128, 8
    $region9: #{glu_ffn_model.3} parent=1 // pred_fallthru
      _
    // Predicated region
    $region10: #{glu_ffn_model.3} parent=1 // pred_check
      _
    $region11: #{glu_ffn_model.3} parent=1 // pred_check_branch
      %39 = sbr.rel (0) target = $region13
    $region12: #{glu_ffn_model.3} parent=1 // pred_region
      %s41 = ssub.s32 32, 32
      %42 = vsyncadd [#allocation7], %s41
      %s44 = sshll.u32 [#allocation8], 4
      %s45 = int_to_ptr.vmem [resolvable:$true] %s44
      %47 = dma.hbm_to_vmem [thread:$0]  %s2, 32, %s45, [#allocation7]
    $region13: #{glu_ffn_model.3} parent=1 // pred_fallthru
      _
    // Predicated region
    $region14: #{glu_ffn_model.3} parent=1 // pred_check
      _
    $region15: #{glu_ffn_model.3} parent=1 // pred_check_branch
      %49 = sbr.rel (0) target = $region17
    $region16: #{glu_ffn_model.3} parent=1 // pred_region
      %s51 = ssub.s32 1024, 1024
      %52 = vsyncadd [#allocation10], %s51
      %s53 = sshll.u32 [#allocation9], 4
      %s54 = int_to_ptr.vmem [resolvable:$true] %s53
      %59 = dma.hbm_to_vmem [thread:$0]  %s3, 1024, %s54, [#allocation10], 64, 64, 4
    $region17: #{glu_ffn_model.3} parent=1 // pred_fallthru
      _
    // Predicated region
    $region18: #{glu_ffn_model.3} parent=1 // pred_check
      _
    $region19: #{glu_ffn_model.3} parent=1 // pred_check_branch
      %61 = sbr.rel (0) target = $region21
    $region20: #{glu_ffn_model.3} parent=1 // pred_region
      %s63 = ssub.s32 16, 16
      %64 = vsyncadd [#allocation10], %s63
      %s66 = sshll.u32 [#allocation11], 4
      %s67 = int_to_ptr.vmem [resolvable:$true] %s66
      %69 = dma.hbm_to_vmem [thread:$0]  %s4, 16, %s67, [#allocation10]
    $region21: #{glu_ffn_model.3} parent=1 // pred_fallthru
      _
    // Predicated region
    $region22: #{glu_ffn_model.3} parent=1 // pred_check
      _
    $region23: #{glu_ffn_model.3} parent=1 // pred_check_branch
      %71 = sbr.rel (0) target = $region25
    $region24: #{glu_ffn_model.3} parent=1 // pred_region
      %72 = dma.done [#allocation4], 128
    $region25: #{glu_ffn_model.3} parent=1 // pred_fallthru
      _
    // Predicated region
    $region26: #{glu_ffn_model.3} parent=1 // pred_check
      _
    $region27: #{glu_ffn_model.3} parent=1 // pred_check_branch
      %74 = sbr.rel (0) target = $region29
    $region28: #{glu_ffn_model.3} parent=1 // pred_region
      %75 = dma.done [#allocation7], 2048
    $region29: #{glu_ffn_model.3} parent=1 // pred_fallthru
      _
    // Predicated region
    $region30: #{glu_ffn_model.3} parent=1 // pred_check
      _
    $region31: #{glu_ffn_model.3} parent=1 // pred_check_branch
      %77 = sbr.rel (0) target = $region33
    $region32: #{glu_ffn_model.3} parent=1 // pred_region
      %78 = dma.done [#allocation7], 32
    $region33: #{glu_ffn_model.3} parent=1 // pred_fallthru
      _
    // Predicated region
    $region34: #{glu_ffn_model.3} parent=1 // pred_check
      _
    $region35: #{glu_ffn_model.3} parent=1 // pred_check_branch
      %80 = sbr.rel (0) target = $region37
    $region36: #{glu_ffn_model.3} parent=1 // pred_region
      %81 = dma.done [#allocation10], 1024
    $region37: #{glu_ffn_model.3} parent=1 // pred_fallthru
      _
    // Predicated region
    $region38: #{glu_ffn_model.3} parent=1 // pred_check
      _
    $region39: #{glu_ffn_model.3} parent=1 // pred_check_branch
      %83 = sbr.rel (0) target = $region41
    $region40: #{glu_ffn_model.3} parent=1 // pred_region
      %84 = dma.done [#allocation10], 16
    $region41: #{glu_ffn_model.3} parent=1 // pred_fallthru
      _
    %p86 = scmp.eq.s32.totalorder 0, 0
    // Predicated region
    $region42: #{glu_ffn_model.3} parent=1 // pred_check
      %p87 = pneg %p86
    $region43: #{glu_ffn_model.3} parent=1 // pred_check_branch
      %89 = sbr.rel (%p87) target = $region45
    $region44: #{glu_ffn_model.3} parent=1 // pred_region
      %90 = vst [vmem:[#allocation2] sm:$0xff] 0.0
      %91 = vst [vmem:[#allocation2 + $0x8] sm:$0xff] 0.0
    $region45: #{glu_ffn_model.3} parent=1 // pred_fallthru
      _
    %v92 = vld [vmem:[#allocation3] sm:$0xf]
    %v93 = vld [vmem:[#allocation3 + $0x4] sm:$0xf]
    %v94 = vld [vmem:[#allocation6] sm:$0xff]
    %v95 = vld [vmem:[#allocation6 + $0x8] sm:$0xff]
    %v96 = vld [vmem:[#allocation6 + $0x10] sm:$0xff]
    %v97 = vld [vmem:[#allocation6 + $0x18] sm:$0xff]
    %v98 = vld [vmem:[#allocation6 + $0x20] sm:$0xff]
    %v99 = vld [vmem:[#allocation6 + $0x28] sm:$0xff]
    %v100 = vld [vmem:[#allocation6 + $0x30] sm:$0xff]
    %v101 = vld [vmem:[#allocation6 + $0x38] sm:$0xff]
    %v102 = vld [vmem:[#allocation6 + $0x40] sm:$0xff]
    %v103 = vld [vmem:[#allocation6 + $0x48] sm:$0xff]
    %v104 = vld [vmem:[#allocation6 + $0x50] sm:$0xff]
    %v105 = vld [vmem:[#allocation6 + $0x58] sm:$0xff]
    %v106 = vld [vmem:[#allocation6 + $0x60] sm:$0xff]
    %v107 = vld [vmem:[#allocation6 + $0x68] sm:$0xff]
    %v108 = vld [vmem:[#allocation6 + $0x70] sm:$0xff]
    %v109 = vld [vmem:[#allocation6 + $0x78] sm:$0xff]
    %v110 = vld [vmem:[#allocation8] sm:$0x3]
    %v112 = vlaneseq
    %v113 = vshrl.u32 %v112, 7
    %v114 = vsub.s32 0, %v113
    %v115 = vrot.slane %v110, %v114
    %v116 = vlaneseq
    %v117 = vshrl.u32 %v116, 7
    %v118 = vsub.s32 1, %v117
    %v119 = vrot.slane %v110, %v118
    %v124 = vunpack.c.l.b16 %v92
    %v125 = vunpack.c.l.b16 %v93
    %v126 = vpack.c.b16 %v125, %v124
    %v144 = vunpack.c.l.b16 %v94
    %v145 = vunpack.c.h.b16 %v94
    %v146 = vunpack.c.l.b16 %v95
    %v147 = vunpack.c.h.b16 %v95
    %v148 = vunpack.c.l.b16 %v96
    %v149 = vunpack.c.h.b16 %v96
    %v150 = vunpack.c.l.b16 %v97
    %v151 = vunpack.c.h.b16 %v97
    %v152 = vunpack.c.l.b16 %v98
    %v153 = vunpack.c.h.b16 %v98
    %v154 = vunpack.c.l.b16 %v99
    %v155 = vunpack.c.h.b16 %v99
    %v156 = vunpack.c.l.b16 %v100
    %v157 = vunpack.c.h.b16 %v100
    %v158 = vunpack.c.l.b16 %v101
    %v159 = vunpack.c.h.b16 %v101
    %v160 = vunpack.c.l.b16 %v102
    %v161 = vunpack.c.h.b16 %v102
    %v162 = vunpack.c.l.b16 %v103
    %v163 = vunpack.c.h.b16 %v103
    %v164 = vunpack.c.l.b16 %v104
    %v165 = vunpack.c.h.b16 %v104
    %v166 = vunpack.c.l.b16 %v105
    %v167 = vunpack.c.h.b16 %v105
    %v168 = vunpack.c.l.b16 %v106
    %v169 = vunpack.c.h.b16 %v106
    %v170 = vunpack.c.l.b16 %v107
    %v171 = vunpack.c.h.b16 %v107
    %v172 = vunpack.c.l.b16 %v108
    %v173 = vunpack.c.h.b16 %v108
    %v174 = vunpack.c.l.b16 %v109
    %v175 = vunpack.c.h.b16 %v109
    %v176 = vpack.c.b16 %v146, %v144
    %v177 = vpack.c.b16 %v147, %v145
    %v178 = vpack.c.b16 %v150, %v148
    %v179 = vpack.c.b16 %v151, %v149
    %v180 = vpack.c.b16 %v154, %v152
    %v181 = vpack.c.b16 %v155, %v153
    %v182 = vpack.c.b16 %v158, %v156
    %v183 = vpack.c.b16 %v159, %v157
    %v184 = vpack.c.b16 %v162, %v160
    %v185 = vpack.c.b16 %v163, %v161
    %v186 = vpack.c.b16 %v166, %v164
    %v187 = vpack.c.b16 %v167, %v165
    %v188 = vpack.c.b16 %v170, %v168
    %v189 = vpack.c.b16 %v171, %v169
    %v190 = vpack.c.b16 %v174, %v172
    %v191 = vpack.c.b16 %v175, %v173
    %208 = vmatprep.subr.bf16.mxu0 %v177
    %209 = vmatpush1.bf16.msra.mxu0 %v176
    %210 = vmatprep.subr.bf16.mxu0 %v179
    %211 = vmatpush1.bf16.msra.mxu0 %v178
    %212 = vmatprep.subr.bf16.mxu0 %v181
    %213 = vmatpush1.bf16.msra.mxu0 %v180
    %214 = vmatprep.subr.bf16.mxu0 %v183
    %215 = vmatpush1.bf16.msra.mxu0 %v182
    %216 = vmatprep.subr.bf16.mxu0 %v185
    %217 = vmatpush1.bf16.msra.mxu0 %v184
    %218 = vmatprep.subr.bf16.mxu0 %v187
    %219 = vmatpush1.bf16.msra.mxu0 %v186
    %220 = vmatprep.subr.bf16.mxu0 %v189
    %221 = vmatpush1.bf16.msra.mxu0 %v188
    %222 = vmatprep.subr.bf16.mxu0 %v191
    %223 = vmatpush1.bf16.msra.mxu0 %v190
    %224 = vmatprep.subr.bf16.mxu0 0
    %225 = vmatpush1.bf16.msra.mxu0 0
    %226 = vmatprep.subr.bf16.mxu0 0
    %227 = vmatpush1.bf16.msra.mxu0 0
    %228 = vmatprep.subr.bf16.mxu0 0
    %229 = vmatpush1.bf16.msra.mxu0 0
    %230 = vmatprep.subr.bf16.mxu0 0
    %231 = vmatpush1.bf16.msra.mxu0 0
    %232 = vmatprep.subr.bf16.mxu0 0
    %233 = vmatpush1.bf16.msra.mxu0 0
    %234 = vmatprep.subr.bf16.mxu0 0
    %235 = vmatpush1.bf16.msra.mxu0 0
    %236 = vmatprep.subr.bf16.mxu0 0
    %237 = vmatpush1.bf16.msra.mxu0 0
    %238 = vmatprep.subr.bf16.mxu0 0
    %239 = vmatpush1.bf16.msra.mxu0 0
    %240 = vmatprep.mubr.bf16.mxu0 0
    %241 = vmatmul.mubr.bf16.gmra.mrb[0].mxu0 %v126
    %v242 = vpop.f32.mrb[0].mxu0
    %v243 = vadd.f32 %v115, %v242
    %v244 = vpop.f32.mrb[0].mxu0
    %v245 = vadd.f32 %v119, %v244
    %v246 = vpop.f32.mrb[0].mxu0
    %v247 = vadd.f32 %v115, %v246
    %v248 = vpop.f32.mrb[0].mxu0
    %v249 = vadd.f32 %v119, %v248
    %250 = vdwg.mxu0
    %v251 = vxor.u32 %v243, 2147483648
    %v252 = vxor.u32 %v247, 2147483648
    %v253 = vmul.f32 %v251, 1.442695
    %v254 = vpow.pop %v253
    %v255 = vmul.f32 %v252, 1.442695
    %v256 = vpow.pop %v255
    %v257 = vadd.f32 %v254, 1.0
    %v258 = vadd.f32 %v256, 1.0
    %v259 = vrcp.pop %v257
    %v260 = vmul.f32 1.0, %v259
    %v261 = vrcp.pop %v258
    %v262 = vmul.f32 1.0, %v261
    %v263 = vmul.f32 %v243, %v260
    %v264 = vmul.f32 %v247, %v262
    %v265 = vmul.f32 %v263, %v245
    %v266 = vmul.f32 %v264, %v249
    %v267 = vld [vmem:[#allocation2] sm:$0xff]
    %v268 = vld [vmem:[#allocation2 + $0x8] sm:$0xff]
    %v269 = vpack.c.bf16 %v266, %v265
    %v270 = vld [vmem:[#allocation9] sm:$0xf]
    %v271 = vld [vmem:[#allocation9 + $0x4] sm:$0xf]
    %v272 = vld [vmem:[#allocation9 + $0x8] sm:$0xf]
    %v273 = vld [vmem:[#allocation9 + $0xc] sm:$0xf]
    %v274 = vld [vmem:[#allocation9 + $0x10] sm:$0xf]
    %v275 = vld [vmem:[#allocation9 + $0x14] sm:$0xf]
    %v276 = vld [vmem:[#allocation9 + $0x18] sm:$0xf]
    %v277 = vld [vmem:[#allocation9 + $0x1c] sm:$0xf]
    %v278 = vld [vmem:[#allocation9 + $0x20] sm:$0xf]
    %v279 = vld [vmem:[#allocation9 + $0x24] sm:$0xf]
    %v280 = vld [vmem:[#allocation9 + $0x28] sm:$0xf]
    %v281 = vld [vmem:[#allocation9 + $0x2c] sm:$0xf]
    %v282 = vld [vmem:[#allocation9 + $0x30] sm:$0xf]
    %v283 = vld [vmem:[#allocation9 + $0x34] sm:$0xf]
    %v284 = vld [vmem:[#allocation9 + $0x38] sm:$0xf]
    %v285 = vld [vmem:[#allocation9 + $0x3c] sm:$0xf]
    %v302 = vunpack.c.l.b16 %v270
    %v303 = vunpack.c.l.b16 %v271
    %v304 = vunpack.c.l.b16 %v272
    %v305 = vunpack.c.l.b16 %v273
    %v306 = vunpack.c.l.b16 %v274
    %v307 = vunpack.c.l.b16 %v275
    %v308 = vunpack.c.l.b16 %v276
    %v309 = vunpack.c.l.b16 %v277
    %v310 = vunpack.c.l.b16 %v278
    %v311 = vunpack.c.l.b16 %v279
    %v312 = vunpack.c.l.b16 %v280
    %v313 = vunpack.c.l.b16 %v281
    %v314 = vunpack.c.l.b16 %v282
    %v315 = vunpack.c.l.b16 %v283
    %v316 = vunpack.c.l.b16 %v284
    %v317 = vunpack.c.l.b16 %v285
    %v318 = vpack.c.b16 %v303, %v302
    %v319 = vpack.c.b16 %v305, %v304
    %v320 = vpack.c.b16 %v307, %v306
    %v321 = vpack.c.b16 %v309, %v308
    %v322 = vpack.c.b16 %v311, %v310
    %v323 = vpack.c.b16 %v313, %v312
    %v324 = vpack.c.b16 %v315, %v314
    %v325 = vpack.c.b16 %v317, %v316
    %334 = vmatprep.subr.bf16.mxu0 0
    %335 = vmatpush1.bf16.msra.mxu0 %v318
    %336 = vmatprep.subr.bf16.mxu0 0
    %337 = vmatpush1.bf16.msra.mxu0 %v319
    %338 = vmatprep.subr.bf16.mxu0 0
    %339 = vmatpush1.bf16.msra.mxu0 %v320
    %340 = vmatprep.subr.bf16.mxu0 0
    %341 = vmatpush1.bf16.msra.mxu0 %v321
    %342 = vmatprep.subr.bf16.mxu0 0
    %343 = vmatpush1.bf16.msra.mxu0 %v322
    %344 = vmatprep.subr.bf16.mxu0 0
    %345 = vmatpush1.bf16.msra.mxu0 %v323
    %346 = vmatprep.subr.bf16.mxu0 0
    %347 = vmatpush1.bf16.msra.mxu0 %v324
    %348 = vmatprep.subr.bf16.mxu0 0
    %349 = vmatpush1.bf16.msra.mxu0 %v325
    %350 = vmatprep.subr.bf16.mxu0 0
    %351 = vmatpush1.bf16.msra.mxu0 0
    %352 = vmatprep.subr.bf16.mxu0 0
    %353 = vmatpush1.bf16.msra.mxu0 0
    %354 = vmatprep.subr.bf16.mxu0 0
    %355 = vmatpush1.bf16.msra.mxu0 0
    %356 = vmatprep.subr.bf16.mxu0 0
    %357 = vmatpush1.bf16.msra.mxu0 0
    %358 = vmatprep.subr.bf16.mxu0 0
    %359 = vmatpush1.bf16.msra.mxu0 0
    %360 = vmatprep.subr.bf16.mxu0 0
    %361 = vmatpush1.bf16.msra.mxu0 0
    %362 = vmatprep.subr.bf16.mxu0 0
    %363 = vmatpush1.bf16.msra.mxu0 0
    %364 = vmatprep.subr.bf16.mxu0 0
    %365 = vmatpush1.bf16.msra.mxu0 0
    %366 = vmatprep.mubr.bf16.mxu0 0
    %367 = vmatmul.mubr.bf16.gmra.mrb[0].mxu0 %v269
    %v368 = vpop.f32.mrb[0].mxu0
    %v369 = vadd.f32 0.0, %v368
    %v370 = vpop.f32.mrb[0].mxu0
    %v371 = vpop.f32.mrb[0].mxu0
    %v372 = vadd.f32 0.0, %v371
    %v373 = vpop.f32.mrb[0].mxu0
    %374 = vdwg.mxu0
    %v375 = vadd.f32 %v267, %v369
    %v376 = vadd.f32 %v268, %v372
    %377 = vst [vmem:[#allocation2] sm:$0xff] %v375
    %378 = vst [vmem:[#allocation2 + $0x8] sm:$0xff] %v376
    // Predicated region
    $region46: #{glu_ffn_model.3} parent=1 // pred_check
      %p379 = pneg %p86
    $region47: #{glu_ffn_model.3} parent=1 // pred_check_branch
      %381 = sbr.rel (%p379) target = $region49
    $region48: #{glu_ffn_model.3} parent=1 // pred_region
      %v382 = vld [vmem:[#allocation2] sm:$0xff]
      %v383 = vld [vmem:[#allocation2 + $0x8] sm:$0xff]
      %v384 = vld [vmem:[#allocation11] sm:$0x1]
      %v386 = vlaneseq
      %v387 = vshrl.u32 %v386, 7
      %v388 = vsub.s32 0, %v387
      %v389 = vrot.slane %v384, %v388
      %v391 = vadd.f32 %v382, %v389
      %v392 = vadd.f32 %v383, %v389
      %393 = vst [vmem:[#allocation12] sm:$0xff] %v391
      %394 = vst [vmem:[#allocation12 + $0x8] sm:$0xff] %v392
    $region49: #{glu_ffn_model.3} parent=1 // pred_fallthru
      _
    // Predicated region
    $region50: #{glu_ffn_model.3} parent=1 // pred_check
      _
    $region51: #{glu_ffn_model.3} parent=1 // pred_check_branch
      %396 = sbr.rel (0) target = $region53
    $region52: #{glu_ffn_model.3} parent=1 // pred_region
      %s398 = ssub.s32 256, 256
      %399 = vsyncadd [#allocation5], %s398
      %s400 = sshll.u32 [#allocation12], 4
      %s401 = int_to_ptr.vmem [resolvable:$true] %s400
      %406 = dma.vmem_to_hbm [thread:$0]  %s401, 256, %s5, [#allocation5], 128, 128, 8
    $region53: #{glu_ffn_model.3} parent=1 // pred_fallthru
      _
    // Predicated region
    $region54: #{glu_ffn_model.3} parent=1 // pred_check
      _
    $region55: #{glu_ffn_model.3} parent=1 // pred_check_branch
      %408 = sbr.rel (0) target = $region57
    $region56: #{glu_ffn_model.3} parent=1 // pred_region
      %409 = dma.done [#allocation5], 256
    $region57: #{glu_ffn_model.3} parent=1 // pred_fallthru
      _
    %410 = vsyncpa [#allocation4], 1
    %411 = vsyncpa [#allocation7], 1
    %412 = vsyncpa [#allocation10], 1
    %413 = vsyncpa [#allocation5], 1

</llo_original>
